<compile_context>
chip_gen: v6e
topology: v6e:2x2x1
jax: 0.10.0
libtpu: 0.0.40
codegen_flags: <defaults>
</compile_context>

<pallas_src>
import numpy as np
import jax
import jax.numpy as jnp
from jax.experimental import pallas as pl
from jax.experimental.pallas import tpu as pltpu


# ----------------------------------------------------------------------------
# Small host-side helpers
# ----------------------------------------------------------------------------
_SINGLE_BUFFER_OK = None


def _single_buffer_supported():
    """Probe once whether BlockSpec(pipeline_mode=pl.Buffered(1)) lowers on the
    installed JAX/libtpu; fall back to default double buffering otherwise."""
    global _SINGLE_BUFFER_OK
    if _SINGLE_BUFFER_OK is None:
        try:
            def _probe(x_ref, o_ref):
                o_ref[...] = x_ref[...] + 1.0

            x = jnp.zeros((8, 128), jnp.float32)
            out = pl.pallas_call(
                _probe,
                out_shape=jax.ShapeDtypeStruct((8, 128), jnp.float32),
                grid=(1,),
                in_specs=[pl.BlockSpec((8, 128), lambda i: (0, 0),
                                       pipeline_mode=pl.Buffered(1))],
                out_specs=pl.BlockSpec((8, 128), lambda i: (0, 0)),
            )(x)
            jax.block_until_ready(out)
            _SINGLE_BUFFER_OK = True
        except Exception:
            _SINGLE_BUFFER_OK = False
    return _SINGLE_BUFFER_OK


def _const_spec(block_shape, index_map):
    """BlockSpec for a grid-invariant operand: single-buffered when supported."""
    if _single_buffer_supported():
        return pl.BlockSpec(block_shape, index_map, pipeline_mode=pl.Buffered(1))
    return pl.BlockSpec(block_shape, index_map)


def _vmem_limit_bytes():
    # Derive the scoped-VMEM limit from the running generation instead of a
    # hard-coded 32 MB (v5e/v6e: 128 MiB physical -> ~96 MiB, v7x: 64 -> 48).
    try:
        cap = int(pltpu.get_tpu_info().vmem_capacity_bytes)
        return max(32 * 1024 * 1024, (cap * 3) // 4)
    except Exception:
        return 32 * 1024 * 1024


def _pick_hw_tile(hw, max_rows=1024):
    """Largest multiple of 8 that divides hw and is <= max_rows (else full)."""
    if hw <= max_rows:
        return hw
    t = (max_rows // 8) * 8
    while t >= 8:
        if hw % t == 0:
            return t
        t -= 8
    return hw


def _pick_channel_tile(c, max_tile=1024):
    """Channel tile: a 128-aligned divisor of c, or the full extent."""
    if c <= max_tile or c % 128 != 0:
        return c
    t = (max_tile // 128) * 128
    while c % t != 0:
        t -= 128
    return t


# ----------------------------------------------------------------------------
# Kernel 1: all pyramid stages fused (pool -> 1x1 conv -> BN -> upsample),
# output = stacked stage priors only (no x passthrough, no HBM concat).
# ----------------------------------------------------------------------------
def stages_kernel(x_ref, p_ref, w_ref, m_ref, u_ref, shift_ref, o_ref, zm_ref):
    # x_ref:     (1, HW, C)   bf16  input features of one batch element
    # p_ref:     (SS, HW)     bf16  stacked adaptive-avg-pool matrices
    # w_ref:     (C, FT)      bf16  stacked 1x1 conv weights, BN scale folded
    # m_ref:     (SS, FT)     f32   block-diagonal stage-selection mask
    # u_ref:     (HWt, SS)    bf16  HW-row tile of the stacked bilinear upsample
    # shift_ref: (1, FT)      f32   concatenated folded BN shifts (post-upsample)
    # o_ref:     (1, HWt, FT) bf16  stacked stage priors for this HW tile
    # zm_ref:    (SS, FT)     bf16  scratch: masked 1x1-conv outputs (per batch)
    h = pl.program_id(1)

    @pl.when(h == 0)
    def _():
        x = x_ref[0]                                                # (HW, C)
        pooled = jnp.dot(p_ref[...], x,
                         preferred_element_type=jnp.float32)       # (SS, C)
        z = jnp.dot(pooled.astype(jnp.bfloat16), w_ref[...],
                    preferred_element_type=jnp.float32)            # (SS, FT)
        zm_ref[...] = (z * m_ref[...]).astype(jnp.bfloat16)

    up = jnp.dot(u_ref[...], zm_ref[...],
                 preferred_element_type=jnp.float32)                # (HWt, FT)
    o_ref[0] = (up + shift_ref[...]).astype(jnp.bfloat16)


def psp_stages_call(x_flat, params, vmem_limit):
    B, HW, C = x_flat.shape
    P, Wc, M, U, Sc = (params["P"], params["Wcat"], params["M"],
                       params["Ublk"], params["Scat"])
    SS = P.shape[0]
    FT = Wc.shape[1]
    HWt = _pick_hw_tile(HW)
    n_h = HW // HWt
    return pl.pallas_call(
        stages_kernel,
        out_shape=jax.ShapeDtypeStruct((B, HW, FT), jnp.bfloat16),
        grid=(B, n_h),
        in_specs=[
            pl.BlockSpec((1, HW, C), lambda b, h: (b, 0, 0)),
            _const_spec((SS, HW), lambda b, h: (0, 0)),
            _const_spec((C, FT), lambda b, h: (0, 0)),
            _const_spec((SS, FT), lambda b, h: (0, 0)),
            pl.BlockSpec((HWt, SS), lambda b, h: (h, 0)),
            _const_spec((1, FT), lambda b, h: (0, 0)),
        ],
        out_specs=pl.BlockSpec((1, HWt, FT), lambda b, h: (b, h, 0)),
        scratch_shapes=[pltpu.VMEM((SS, FT), jnp.bfloat16)],
        compiler_params=pltpu.CompilerParams(
            dimension_semantics=("parallel", "arbitrary"),
            vmem_limit_bytes=vmem_limit),
    )(x_flat, P, Wc, M, U, Sc)


# ----------------------------------------------------------------------------
# Kernel 2: 3x3 conv (pad=1, no bias) + folded BN over [priors | x] channels,
# phased Cin-reduction grid (priors tiles then x tiles), accumulate in o_ref.
# ----------------------------------------------------------------------------
def make_bottleneck_kernel(H, W, n_ct_p, n_ct_x, max_ct):
    HW = H * W
    PAD = W + 1              # zero rows above/below the flat (HW, ct) image
    n_k = n_ct_p + n_ct_x

    def kernel(p_ref, x_ref, wp_ref, wx_ref, shift_ref, o_ref, xf_ref):
        # p_ref:     (1, HW, ct_p)        bf16  channel tile of the stage priors
        # x_ref:     (1, HW, ct_x)        bf16  channel tile of the input feats
        # wp_ref:    (9, ct_p, F)         bf16  3x3 weights for prior channels
        # wx_ref:    (9, ct_x, F)         bf16  3x3 weights for input channels
        # shift_ref: (1, F)               f32   folded BN shift
        # o_ref:     (1, HW, F)           f32   VMEM-resident output/accumulator
        # xf_ref:    (HW + 2*PAD, max_ct) bf16  scratch: zero-bordered flat image
        k = pl.program_id(1)

        @pl.when(k == 0)
        def _():
            o_ref[...] = jnp.zeros_like(o_ref)
            zp = jnp.zeros((PAD, max_ct), jnp.bfloat16)
            xf_ref[:PAD, :] = zp          # zero border, written once per batch
            xf_ref[PAD + HW:, :] = zp

        # Column-wrap masks for ox = -1 / +1, generated in-kernel (no HBM
        # operand and no (2, HW, 1) lane padding).
        col = jax.lax.broadcasted_iota(jnp.int32, (HW, 1), 0) % W
        mask_l = (col != 0).astype(jnp.float32)
        mask_r = (col != W - 1).astype(jnp.float32)

        def accumulate(src_ref, w_ref):
            ct = src_ref.shape[-1]
            xf_ref[PAD:PAD + HW, :ct] = src_ref[0]
            # Flat-shift trick: tap (oy, ox) is a contiguous slice at offset
            # PAD + oy*W + ox; horizontal wrap rows are zeroed by the per-ox
            # masks applied to the tap's MXU result.
            for ox in (-1, 0, 1):
                for oy in (-1, 0, 1):
                    tap = (oy + 1) * 3 + (ox + 1)
                    start = PAD + oy * W + ox
                    s = xf_ref[start:start + HW, :ct]                # (HW, ct)
                    d = jnp.dot(s, w_ref[tap],
                                preferred_element_type=jnp.float32)  # (HW, F)
                    if ox == -1:
                        d = d * mask_l
                    elif ox == 1:
                        d = d * mask_r
                    o_ref[0, :, :] += d

        @pl.when(k < n_ct_p)          # phase 1: walk the priors channel tiles
        def _():
            accumulate(p_ref, wp_ref)

        @pl.when(k >= n_ct_p)         # phase 2: walk the input channel tiles
        def _():
            accumulate(x_ref, wx_ref)

        @pl.when(k == n_k - 1)
        def _():
            o_ref[0, :, :] += shift_ref[...]

    return kernel


def bottleneck_call(priors, x_flat, params, H, W, vmem_limit):
    B, HW, FT = priors.shape
    C = x_flat.shape[-1]
    wp, wx, bshift = params["bWp"], params["bWx"], params["bshift"]
    F = wp.shape[-1]
    ct_p = _pick_channel_tile(FT)
    ct_x = _pick_channel_tile(C)
    n_ct_p = FT // ct_p
    n_ct_x = C // ct_x
    n_k = n_ct_p + n_ct_x
    max_ct = max(ct_p, ct_x)
    PAD = W + 1
    return pl.pallas_call(
        make_bottleneck_kernel(H, W, n_ct_p, n_ct_x, max_ct),
        out_shape=jax.ShapeDtypeStruct((B, HW, F), jnp.float32),
        grid=(B, n_k),
        in_specs=[
            pl.BlockSpec((1, HW, ct_p),
                         lambda b, k: (b, 0, jnp.minimum(k, n_ct_p - 1))),
            pl.BlockSpec((1, HW, ct_x),
                         lambda b, k: (b, 0, jnp.maximum(k - n_ct_p, 0))),
            pl.BlockSpec((9, ct_p, F),
                         lambda b, k: (0, jnp.minimum(k, n_ct_p - 1), 0)),
            pl.BlockSpec((9, ct_x, F),
                         lambda b, k: (0, jnp.maximum(k - n_ct_p, 0), 0)),
            _const_spec((1, F), lambda b, k: (0, 0)),
        ],
        out_specs=pl.BlockSpec((1, HW, F), lambda b, k: (b, 0, 0)),
        scratch_shapes=[pltpu.VMEM((HW + 2 * PAD, max_ct), jnp.bfloat16)],
        compiler_params=pltpu.CompilerParams(
            dimension_semantics=("parallel", "arbitrary"),
            vmem_limit_bytes=vmem_limit),
    )(priors, x_flat, wp, wx, bshift)


# ----------------------------------------------------------------------------
# Host-side glue: pooling / upsample matrices, BN folding, parameter packing
# ----------------------------------------------------------------------------
def adaptive_pool_matrix(in_size, out_size):
    # PyTorch AdaptiveAvgPool bins: [floor(i*in/out), ceil((i+1)*in/out))
    M = np.zeros((out_size, in_size), dtype=np.float32)
    for i in range(out_size):
        start = int(np.floor(i * in_size / out_size))
        end = int(np.ceil((i + 1) * in_size / out_size))
        M[i, start:end] = 1.0 / (end - start)
    return M


def bilinear_matrix(out_size, in_size):
    # F.interpolate(mode='bilinear', align_corners=True), one axis
    M = np.zeros((out_size, in_size), dtype=np.float32)
    if in_size == 1:
        M[:, 0] = 1.0
        return M
    for h in range(out_size):
        src = h * (in_size - 1) / (out_size - 1) if out_size > 1 else 0.0
        i0 = min(int(np.floor(src)), in_size - 1)
        i1 = min(i0 + 1, in_size - 1)
        frac = src - i0
        M[h, i0] += 1.0 - frac
        M[h, i1] += frac
    return M


def bn_fold(gamma, beta, mean, var, eps=1e-5):
    scale = gamma / np.sqrt(var + eps)
    shift = beta - mean * scale
    return scale, shift


def make_psp_params(key, features, out_features, sizes, H, W):
    F = out_features
    n = len(sizes)
    FT = n * F
    HW = H * W
    keys = jax.random.split(key, n * 5 + 5)
    ki = 0

    ss_tot = sum(s * s for s in sizes)
    P_rows, U_cols = [], []
    W_cat = np.zeros((features, FT), np.float32)
    M = np.zeros((ss_tot, FT), np.float32)
    shift_cat = np.zeros((FT,), np.float32)
    off = 0
    for si, S in enumerate(sizes):
        w = np.asarray(jax.random.normal(keys[ki], (features, F), jnp.float32)) * 0.1; ki += 1
        gamma = np.asarray(0.5 + jax.random.uniform(keys[ki], (F,), jnp.float32)); ki += 1
        beta = np.asarray(jax.random.normal(keys[ki], (F,), jnp.float32)) * 0.1; ki += 1
        mean = np.asarray(jax.random.normal(keys[ki], (F,), jnp.float32)) * 0.1; ki += 1
        var = np.asarray(0.5 + jax.random.uniform(keys[ki], (F,), jnp.float32)); ki += 1
        scale, shift = bn_fold(gamma, beta, mean, var)
        W_cat[:, si * F:(si + 1) * F] = w * scale[None, :]      # fold BN scale
        shift_cat[si * F:(si + 1) * F] = shift                  # BN shift (post-upsample)

        Ph = adaptive_pool_matrix(H, S)
        Pw = adaptive_pool_matrix(W, S)
        P_rows.append(np.einsum("ih,jw->ijhw", Ph, Pw).reshape(S * S, HW))
        Uh = bilinear_matrix(H, S)
        Uw = bilinear_matrix(W, S)
        U_cols.append(np.einsum("hi,wj->hwij", Uh, Uw).reshape(HW, S * S))

        M[off:off + S * S, si * F:(si + 1) * F] = 1.0
        off += S * S

    P_all = np.concatenate(P_rows, axis=0)        # (SS_tot, HW)
    U_blk = np.concatenate(U_cols, axis=1)        # (HW, SS_tot)

    c_total = FT + features                       # priors channels first, then x
    bw = np.asarray(jax.random.normal(keys[ki], (3, 3, c_total, F), jnp.float32)) * 0.05; ki += 1
    gamma = np.asarray(0.5 + jax.random.uniform(keys[ki], (F,), jnp.float32)); ki += 1
    beta = np.asarray(jax.random.normal(keys[ki], (F,), jnp.float32)) * 0.1; ki += 1
    mean = np.asarray(jax.random.normal(keys[ki], (F,), jnp.float32)) * 0.1; ki += 1
    var = np.asarray(0.5 + jax.random.uniform(keys[ki], (F,), jnp.float32)); ki += 1
    bscale, bshift = bn_fold(gamma, beta, mean, var)
    bw9 = (bw * bscale[None, None, None, :]).reshape(9, c_total, F)  # fold BN scale
    bWp = bw9[:, :FT, :]        # 3x3 weights acting on the stage priors
    bWx = bw9[:, FT:, :]        # 3x3 weights acting on the input features

    return {
        "P": jnp.asarray(P_all, jnp.bfloat16),
        "Wcat": jnp.asarray(W_cat, jnp.bfloat16),
        "M": jnp.asarray(M, jnp.float32),
        "Ublk": jnp.asarray(U_blk, jnp.bfloat16),
        "Scat": jnp.asarray(shift_cat.reshape(1, FT), jnp.float32),
        "bWp": jnp.asarray(bWp, jnp.bfloat16),
        "bWx": jnp.asarray(bWx, jnp.bfloat16),
        "bshift": jnp.asarray(bshift.reshape(1, F), jnp.float32),
    }


# ----------------------------------------------------------------------------
# Forward pass (NCHW in / NCHW out, like the PyTorch module)
# ----------------------------------------------------------------------------
def psp_forward(feats_nchw, params):
    B, C, H, W = feats_nchw.shape
    vmem_limit = _vmem_limit_bytes()
    x_flat = jnp.transpose(feats_nchw, (0, 2, 3, 1)).reshape(B, H * W, C)
    x_flat = x_flat.astype(jnp.bfloat16)
    priors = psp_stages_call(x_flat, params, vmem_limit)             # (B, HW, 4F) bf16
    out_flat = bottleneck_call(priors, x_flat, params, H, W, vmem_limit)  # (B, HW, F) f32
    F = out_flat.shape[-1]
    return jnp.transpose(out_flat.reshape(B, H, W, F), (0, 3, 1, 2))


# ----------------------------------------------------------------------------
# Pure-JAX reference (same math & same bf16 quantization points, no Pallas)
# ----------------------------------------------------------------------------
def psp_reference(feats_nchw, params):
    B, C, H, W = feats_nchw.shape
    hp = jax.lax.Precision.HIGHEST
    f32 = lambda a: a.astype(jnp.float32)

    x = jnp.transpose(feats_nchw, (0, 2, 3, 1)).reshape(B, H * W, C)
    xb = f32(x.astype(jnp.bfloat16))
    P, Wc, U = f32(params["P"]), f32(params["Wcat"]), f32(params["Ublk"])

    pooled = jnp.einsum("ph,bhc->bpc", P, xb, precision=hp)
    z = jnp.einsum("bpc,cf->bpf", f32(pooled.astype(jnp.bfloat16)), Wc, precision=hp)
    zm = f32((z * params["M"][None]).astype(jnp.bfloat16))
    up = jnp.einsum("hp,bpf->bhf", U, zm, precision=hp)
    priors = f32((up + params["Scat"][None]).astype(jnp.bfloat16))   # (B, HW, 4F)

    FT = priors.shape[-1]
    cat = jnp.concatenate([priors, xb], axis=-1).reshape(B, H, W, FT + C)
    xp = jnp.pad(cat, ((0, 0), (1, 1), (1, 1), (0, 0)))
    bw = jnp.concatenate([f32(params["bWp"]), f32(params["bWx"])], axis=1)
    Fo = bw.shape[-1]
    acc = jnp.zeros((B, H, W, Fo), jnp.float32)
    for dy in range(3):
        for dx in range(3):
            acc = acc + jnp.einsum("bhwc,cf->bhwf",
                                   xp[:, dy:dy + H, dx:dx + W, :],
                                   bw[dy * 3 + dx], precision=hp)
    acc = acc + params["bshift"].reshape(1, 1, 1, Fo)
    return jnp.transpose(acc, (0, 3, 1, 2))


# ----------------------------------------------------------------------------
if __name__ == "__main__":
    B, C, H, W = 2, 4, 16, 16          # features = 4
    OUT_FEATURES = 32                  # (PyTorch default is 512; kept small here)
    SIZES = (1, 2, 3, 6)

    key = jax.random.PRNGKey(0)
    k_x, k_p = jax.random.split(key)
    feats = jax.random.normal(k_x, (B, C, H, W), jnp.float32)  # NCHW input
    params = make_psp_params(k_p, C, OUT_FEATURES, SIZES, H, W)

    out = jax.block_until_ready(psp_forward(feats, params))
    ref = jax.block_until_ready(psp_reference(feats, params))

    assert out.shape == (B, OUT_FEATURES, H, W), out.shape
    np.testing.assert_allclose(np.asarray(out), np.asarray(ref), rtol=2e-2, atol=2e-2)

    print("KERNEL_OK")
</pallas_src>

<mosaic_0001>
module attributes {stable_mosaic.version = 11 : i64} {
  func.func @_probe(%arg0: i32, %arg1: memref<8x128xf32, #tpu.memory_space<vmem>>, %arg2: memref<8x128xf32, #tpu.memory_space<vmem>>) attributes {dimension_semantics = [#tpu.dimension_semantics<arbitrary>], iteration_bounds = array<i64: 1>, scalar_prefetch = 0 : i64, scratch_operands = 0 : i64, tpu.core_type = #tpu.core_type<tc>, window_params = [{pipeline_mode = #tpu.pipeline_mode<synchronous>, transform_indices = @transform_0, window_bounds = array<i64: 8, 128>}, {pipeline_mode = #tpu.pipeline_mode<synchronous>, transform_indices = @transform_1, window_bounds = array<i64: 8, 128>}]} {
    %c0 = arith.constant 0 : index
    %c0_0 = arith.constant 0 : index
    %0 = vector.load %arg1[%c0, %c0_0] : memref<8x128xf32, #tpu.memory_space<vmem>>, vector<8x128xf32>
    %cst = arith.constant 1.000000e+00 : f32
    %1 = vector.broadcast %cst : f32 to vector<8x128xf32>
    %2 = arith.addf %0, %1 : vector<8x128xf32>
    %c0_1 = arith.constant 0 : index
    %c0_2 = arith.constant 0 : index
    %3 = vector.load %arg2[%c0_1, %c0_2] : memref<8x128xf32, #tpu.memory_space<vmem>>, vector<8x128xf32>
    tpu.vector_store %arg2[%c0_1, %c0_2], %2 {strides = array<i32>} : memref<8x128xf32, #tpu.memory_space<vmem>>, vector<8x128xf32>,
    return
  }
  func.func @transform_0(%arg0: i32) -> (i32, i32) {
    %c0_i32 = arith.constant 0 : i32
    %c0_i32_0 = arith.constant 0 : i32
    %c0_i32_1 = arith.constant 0 : i32
    return %c0_i32, %c0_i32_0 : i32, i32
  }
  func.func @transform_1(%arg0: i32) -> (i32, i32) {
    %c0_i32 = arith.constant 0 : i32
    %c0_i32_0 = arith.constant 0 : i32
    %c0_i32_1 = arith.constant 0 : i32
    return %c0_i32, %c0_i32_0 : i32, i32
  }
}

module attributes {stable_mosaic.version = 11 : i64} {
  func.func @stages_kernel(%arg0: i32, %arg1: i32, %arg2: memref<1x256x4xbf16, #tpu.memory_space<vmem>>, %arg3: memref<50x256xbf16, #tpu.memory_space<vmem>>, %arg4: memref<4x128xbf16, #tpu.memory_space<vmem>>, %arg5: memref<50x128xf32, #tpu.memory_space<vmem>>, %arg6: memref<256x50xbf16, #tpu.memory_space<vmem>>, %arg7: memref<1x128xf32, #tpu.memory_space<vmem>>, %arg8: memref<1x256x128xbf16, #tpu.memory_space<vmem>>, %arg9: memref<50x128xbf16, #tpu.memory_space<vmem>>) attributes {dimension_semantics = [#tpu.dimension_semantics<parallel>, #tpu.dimension_semantics<arbitrary>], iteration_bounds = array<i64: 2, 1>, scalar_prefetch = 0 : i64, scratch_operands = 1 : i64, tpu.core_type = #tpu.core_type<tc>, window_params = [{transform_indices = @transform_0, window_bounds = array<i64: 1, 256, 4>}, {pipeline_mode = #tpu.pipeline_mode<synchronous>, transform_indices = @transform_1, window_bounds = array<i64: 50, 256>}, {pipeline_mode = #tpu.pipeline_mode<synchronous>, transform_indices = @transform_2, window_bounds = array<i64: 4, 128>}, {pipeline_mode = #tpu.pipeline_mode<synchronous>, transform_indices = @transform_3, window_bounds = array<i64: 50, 128>}, {transform_indices = @transform_4, window_bounds = array<i64: 256, 50>}, {pipeline_mode = #tpu.pipeline_mode<synchronous>, transform_indices = @transform_5, window_bounds = array<i64: 1, 128>}, {transform_indices = @transform_6, window_bounds = array<i64: 1, 256, 128>}]} {
    %c0_i32 = arith.constant 0 : i32
    %0 = arith.cmpi eq, %arg1, %c0_i32 : i32
    %1 = arith.extui %0 : i1 to i32
    %c0_i32_0 = arith.constant 0 : i32
    %2 = arith.cmpi ne, %1, %c0_i32_0 : i32
    scf.if %2 {
      %c0_9 = arith.constant 0 : index
      %c0_10 = arith.constant 0 : index
      %c0_11 = arith.constant 0 : index
      %13 = vector.load %arg2[%c0_9, %c0_10, %c0_11] : memref<1x256x4xbf16, #tpu.memory_space<vmem>>, vector<1x256x4xbf16>
      %14 = vector.shape_cast %13 : vector<1x256x4xbf16> to vector<256x4xbf16>
      %c0_12 = arith.constant 0 : index
      %c0_13 = arith.constant 0 : index
      %15 = vector.load %arg3[%c0_12, %c0_13] : memref<50x256xbf16, #tpu.memory_space<vmem>>, vector<50x256xbf16>
      %cst_14 = arith.constant dense<0.000000e+00> : vector<50x4xf32>
      %16 = tpu.matmul %15, %14, %cst_14 {dimension_numbers = #tpu.dot_dimension_numbers<[1], [0], [0], [1], [0, 0, 1, 1], [], []>} : vector<50x256xbf16>, vector<256x4xbf16>, vector<50x4xf32> -> vector<50x4xf32>
      %17 = arith.truncf %16 : vector<50x4xf32> to vector<50x4xbf16>
      %c0_15 = arith.constant 0 : index
      %c0_16 = arith.constant 0 : index
      %18 = vector.load %arg4[%c0_15, %c0_16] : memref<4x128xbf16, #tpu.memory_space<vmem>>, vector<4x128xbf16>
      %cst_17 = arith.constant dense<0.000000e+00> : vector<50x128xf32>
      %19 = tpu.matmul %17, %18, %cst_17 {dimension_numbers = #tpu.dot_dimension_numbers<[1], [0], [0], [1], [0, 0, 1, 1], [], []>} : vector<50x4xbf16>, vector<4x128xbf16>, vector<50x128xf32> -> vector<50x128xf32>
      %c0_18 = arith.constant 0 : index
      %c0_19 = arith.constant 0 : index
      %20 = vector.load %arg5[%c0_18, %c0_19] : memref<50x128xf32, #tpu.memory_space<vmem>>, vector<50x128xf32>
      %21 = arith.mulf %19, %20 : vector<50x128xf32>
      %22 = arith.truncf %21 : vector<50x128xf32> to vector<50x128xbf16>
      %c0_20 = arith.constant 0 : index
      %c0_21 = arith.constant 0 : index
      %23 = vector.load %arg9[%c0_20, %c0_21] : memref<50x128xbf16, #tpu.memory_space<vmem>>, vector<50x128xbf16>
      tpu.vector_store %arg9[%c0_20, %c0_21], %22 {strides = array<i32>} : memref<50x128xbf16, #tpu.memory_space<vmem>>, vector<50x128xbf16>,
    } else {
    }
    %c0 = arith.constant 0 : index
    %c0_1 = arith.constant 0 : index
    %3 = vector.load %arg6[%c0, %c0_1] : memref<256x50xbf16, #tpu.memory_space<vmem>>, vector<256x50xbf16>
    %c0_2 = arith.constant 0 : index
    %c0_3 = arith.constant 0 : index
    %4 = vector.load %arg9[%c0_2, %c0_3] : memref<50x128xbf16, #tpu.memory_space<vmem>>, vector<50x128xbf16>
    %cst = arith.constant dense<0.000000e+00> : vector<256x128xf32>
    %5 = tpu.matmul %3, %4, %cst {dimension_numbers = #tpu.dot_dimension_numbers<[1], [0], [0], [1], [0, 0, 1, 1], [], []>} : vector<256x50xbf16>, vector<50x128xbf16>, vector<256x128xf32> -> vector<256x128xf32>
    %c0_4 = arith.constant 0 : index
    %c0_5 = arith.constant 0 : index
    %6 = vector.load %arg7[%c0_4, %c0_5] : memref<1x128xf32, #tpu.memory_space<vmem>>, vector<1x128xf32>
    %7 = vector.broadcast %6 : vector<1x128xf32> to vector<256x128xf32>
    %8 = arith.addf %5, %7 : vector<256x128xf32>
    %9 = arith.truncf %8 : vector<256x128xf32> to vector<256x128xbf16>
    %c0_6 = arith.constant 0 : index
    %c0_7 = arith.constant 0 : index
    %c0_8 = arith.constant 0 : index
    %10 = vector.load %arg8[%c0_6, %c0_7, %c0_8] : memref<1x256x128xbf16, #tpu.memory_space<vmem>>, vector<1x256x128xbf16>
    %11 = vector.shape_cast %10 : vector<1x256x128xbf16> to vector<256x128xbf16>
    %12 = vector.shape_cast %9 : vector<256x128xbf16> to vector<1x256x128xbf16>
    tpu.vector_store %arg8[%c0_6, %c0_7, %c0_8], %12 {strides = array<i32>} : memref<1x256x128xbf16, #tpu.memory_space<vmem>>, vector<1x256x128xbf16>,
    return
  }
  func.func @transform_0(%arg0: i32, %arg1: i32) -> (i32, i32, i32) {
    %c0_i32 = arith.constant 0 : i32
    %c0_i32_0 = arith.constant 0 : i32
    %c0_i32_1 = arith.constant 0 : i32
    return %arg0, %c0_i32, %c0_i32_0 : i32, i32, i32
  }
  func.func @transform_1(%arg0: i32, %arg1: i32) -> (i32, i32) {
    %c0_i32 = arith.constant 0 : i32
    %c0_i32_0 = arith.constant 0 : i32
    %c0_i32_1 = arith.constant 0 : i32
    return %c0_i32, %c0_i32_0 : i32, i32
  }
  func.func @transform_2(%arg0: i32, %arg1: i32) -> (i32, i32) {
    %c0_i32 = arith.constant 0 : i32
    %c0_i32_0 = arith.constant 0 : i32
    %c0_i32_1 = arith.constant 0 : i32
    return %c0_i32, %c0_i32_0 : i32, i32
  }
  func.func @transform_3(%arg0: i32, %arg1: i32) -> (i32, i32) {
    %c0_i32 = arith.constant 0 : i32
    %c0_i32_0 = arith.constant 0 : i32
    %c0_i32_1 = arith.constant 0 : i32
    return %c0_i32, %c0_i32_0 : i32, i32
  }
  func.func @transform_4(%arg0: i32, %arg1: i32) -> (i32, i32) {
    %c0_i32 = arith.constant 0 : i32
    %c0_i32_0 = arith.constant 0 : i32
    return %arg1, %c0_i32 : i32, i32
  }
  func.func @transform_5(%arg0: i32, %arg1: i32) -> (i32, i32) {
    %c0_i32 = arith.constant 0 : i32
    %c0_i32_0 = arith.constant 0 : i32
    %c0_i32_1 = arith.constant 0 : i32
    return %c0_i32, %c0_i32_0 : i32, i32
  }
  func.func @transform_6(%arg0: i32, %arg1: i32) -> (i32, i32, i32) {
    %c0_i32 = arith.constant 0 : i32
    %c0_i32_0 = arith.constant 0 : i32
    return %arg0, %arg1, %c0_i32 : i32, i32, i32
  }
}

</mosaic_0001>

<llo_original>
// kernel: tpu_custom_call.1
$region0: #{tpu_custom_call.1}
  #allocation0 [shape = 'u32[]', space=smem, size = 0x4, offset = 0x4, fixed_abs, tag = 'smem constant byte address 0x4 - core index']
  #allocation1 [shape = 'u32[144,128]{1,0:T(1,128)}', space=vmem, size = 0x12000, scoped, tag = 'internal scratch']
  %s0 = inlined_call_operand.hbm [shape: f32[8,128], index: 0, kind: input, shape index: {}]
  %s1 = inlined_call_operand.hbm [shape: f32[8,128], index: 1, kind: output, shape index: {}]
  %s2 = sld [smem:[#allocation0]]
  $region18: #{tpu_custom_call.1} parent=0
    _
  %s4 = ssub.s32 1, %s2
  %s5 = scalar_select 0, %s4, %s2
  $region1: #{tpu_custom_call.1} parent=0
    #allocation2 [shape = 'u8[4096]{0}', space=vmem, size = 0x1000, scoped, tag = 'input window, operand 0, single buffered']
    #allocation3 [shape = 's32[1]{0}', space=sflag, size = 0x4, scoped, tag = 'scoped memory for tpu_custom_call.1']
    #allocation4 [shape = 's32[1]{0}', space=sflag, size = 0x4, scoped, tag = 'scoped memory for tpu_custom_call.1']
    #allocation5 [shape = 'u8[4096]{0}', space=vmem, size = 0x1000, scoped, tag = 'output window, operand 0, single buffered']
    %6 = vsyncpa [#allocation3], 0
    %7 = vsyncpa [#allocation4], 0
    // Predicated region
    $region2: #{tpu_custom_call.1} parent=1 // pred_check
      _
    $region3: #{tpu_custom_call.1} parent=1 // pred_check_branch
      %9 = sbr.rel (0) target = $region5
    $region4: #{tpu_custom_call.1} parent=1 // pred_region
      %s11 = ssub.s32 128, 128
      %12 = vsyncadd [#allocation3], %s11
      %s14 = sshll.u32 [#allocation2], 4
      %s15 = int_to_ptr.vmem [resolvable:$true] %s14
      %17 = dma.hbm_to_vmem [thread:$0]  %s0, 128, %s15, [#allocation3]
    $region5: #{tpu_custom_call.1} parent=1 // pred_fallthru
      _
    // Predicated region
    $region6: #{tpu_custom_call.1} parent=1 // pred_check
      _
    $region7: #{tpu_custom_call.1} parent=1 // pred_check_branch
      %19 = sbr.rel (0) target = $region9
    $region8: #{tpu_custom_call.1} parent=1 // pred_region
      %20 = dma.done [#allocation3], 128
    $region9: #{tpu_custom_call.1} parent=1 // pred_fallthru
      _
    %v21 = vld [vmem:[#allocation2] sm:$0xff]
    %v22 = vadd.f32 %v21, 1.0
    %23 = vst [vmem:[#allocation5] sm:$0xff] %v22
    // Predicated region
    $region10: #{tpu_custom_call.1} parent=1 // pred_check
      _
    $region11: #{tpu_custom_call.1} parent=1 // pred_check_branch
      %25 = sbr.rel (0) target = $region13
    $region12: #{tpu_custom_call.1} parent=1 // pred_region
      %s27 = ssub.s32 128, 128
      %28 = vsyncadd [#allocation4], %s27
      %s30 = sshll.u32 [#allocation5], 4
      %s31 = int_to_ptr.vmem [resolvable:$true] %s30
      %33 = dma.vmem_to_hbm [thread:$0]  %s31, 128, %s1, [#allocation4]
    $region13: #{tpu_custom_call.1} parent=1 // pred_fallthru
      _
    // Predicated region
    $region14: #{tpu_custom_call.1} parent=1 // pred_check
      _
    $region15: #{tpu_custom_call.1} parent=1 // pred_check_branch
      %35 = sbr.rel (0) target = $region17
    $region16: #{tpu_custom_call.1} parent=1 // pred_region
      %36 = dma.done [#allocation4], 128
    $region17: #{tpu_custom_call.1} parent=1 // pred_fallthru
      _
    %37 = vsyncpa [#allocation3], 1
    %38 = vsyncpa [#allocation4], 1

// kernel: tpu_custom_call.1
$region0: #{tpu_custom_call.1}
  #allocation0 [shape = 'u32[]', space=smem, size = 0x4, offset = 0x4, fixed_abs, tag = 'smem constant byte address 0x4 - core index']
  #allocation1 [shape = 'u32[144,128]{1,0:T(1,128)}', space=vmem, size = 0x12000, scoped, tag = 'internal scratch']
  #allocation2 [shape = 'bf16[50,128]{1,0:T(8,128)(2,1)}', space=vmem, size = 0x3800, scoped, tag = 'scratch operand']
  %s0 = inlined_call_operand.vmem [shape: bf16[2,256,4], index: 0, kind: input, shape index: {}]
  %s1 = inlined_call_operand.vmem [shape: bf16[50,256], index: 1, kind: input, shape index: {}]
  %s2 = inlined_call_operand.vmem [shape: bf16[4,128], index: 2, kind: input, shape index: {}]
  %s3 = inlined_call_operand.vmem [shape: f32[50,128], index: 3, kind: input, shape index: {}]
  %s4 = inlined_call_operand.vmem [shape: bf16[256,50], index: 4, kind: input, shape index: {}]
  %s5 = inlined_call_operand.vmem [shape: f32[1,128], index: 5, kind: input, shape index: {}]
  %s6 = inlined_call_operand.hbm [shape: bf16[2,256,128], index: 6, kind: output, shape index: {}]
  %s7 = sld [smem:[#allocation0]]
  $region61: #{tpu_custom_call.1} parent=0
    _
  %s9 = ssub.s32 1, %s7
  %s10 = scalar_select 0, %s9, %s7
  $region1: #{tpu_custom_call.1} parent=0
    #allocation3 [shape = 'u8[131072]{0}', space=vmem, size = 0x20000, scoped, tag = 'output window, operand 0']
    #allocation4 [shape = 's32[2]{0}', space=sflag, size = 0x8, scoped, tag = 'scoped memory for tpu_custom_call.1']
    %11 = vsyncpa [#allocation4], 0
    %s12 = scalar_lea.sflag [#allocation4], 1
    %13 = vsyncpa %s12, 0
    loop: start=0, step=1, limit=4
    $region2: #{tpu_custom_call.1} parent=1 // loop_pre_header
      _
    $region3: #{tpu_custom_call.1} parent=1 // loop_header
      %s15 = sphi 0, %s19
      %p16 = scmp.ge.s32.totalorder %s15, 4
      %s22 = sphi 0, %s34
      %s23 = sphi 0, %s30
      %s24 = sphi 0, %s22
      %s25 = sphi 0, %s23
      %s26 = sphi 0, %s24
      %s27 = sphi 0, %s25
      %s37 = sphi 0, %s39
      %s40 = sphi 0, %s37
      %s41 = sphi 0, %s40
      %s57 = sphi 0, %s41
      %s61 = sphi 0, %s61
      %s63 = sphi 0, %s61
      %s64 = sphi 0, %s63
      %s78 = sphi 0, %s64
      %s82 = sphi 0, %s82
      %s84 = sphi 0, %s82
      %s85 = sphi 0, %s84
      %s99 = sphi 0, %s85
      %s103 = sphi 0, %s103
      %s105 = sphi 0, %s103
      %s106 = sphi 0, %s105
      %s120 = sphi 0, %s106
      %s126 = sphi 0, %s128
      %s129 = sphi 0, %s126
      %s130 = sphi 0, %s129
      %s146 = sphi 0, %s130
      %s150 = sphi 0, %s150
      %s152 = sphi 0, %s150
      %s153 = sphi 0, %s152
      %s167 = sphi 0, %s153
      %s175 = sphi 0, %s177
      %s178 = sphi 0, %s175
      %s179 = sphi 0, %s178
      %s195 = sphi 0, %s179
    $region4: #{tpu_custom_call.1} parent=1 // loop_header_branch
      %18 = sbr.rel (%p16) target = $region8
    $region5: #{tpu_custom_call.1} parent=1 // loop_body
      %s20 = ssub.s32 %s15, 1
      %s21 = ssub.s32 %s15, 2
      %s28 = sadd.s32 1, %s23
      %p29 = scmp.ge.s32.totalorder %s28, 1
      %s30 = scalar_select %p29, 0, %s28
      %s31 = sadd.s32 1, %s22
      %s32 = scalar_select %p29, %s31, %s22
      %p33 = scmp.ge.s32.totalorder %s32, 2
      %s34 = scalar_select %p33, 0, %s32
      %s35 = ssub.s32 %s22, %s34
      %p36 = scmp.eq.s32.totalorder %s35, 0
      %s38 = sadd.s32 %s37, 1
      %s39 = scalar_select %p36, %s37, %s38
      %p42 = pneg %p36
      %p43 = scmp.eq.s32.totalorder %s15, 1
      %p44 = por %p42, %p43
      %p45 = scmp.ne.s32.totalorder %s37, %s40
      %p46 = scmp.eq.s32.totalorder %s15, 0
      %p47 = por %p45, %p46
      %p48 = scmp.ne.s32.totalorder %s37, %s40
      %p49 = scmp.eq.s32.totalorder %s20, 1
      %p50 = por %p48, %p49
      %p51 = scmp.ne.s32.totalorder %s40, %s41
      %p52 = scmp.eq.s32.totalorder %s20, 0
      %p53 = por %p51, %p52
      %p54 = scmp.ne.s32.totalorder %s40, %s41
      %p55 = scmp.eq.s32.totalorder %s21, 1
      %p56 = por %p54, %p55
      %p58 = scmp.ne.s32.totalorder %s41, %s57
      %p59 = scmp.eq.s32.totalorder %s21, 0
      %p60 = por %p58, %p59
      %s62 = sadd.s32 %s61, 1
      %p65 = scmp.eq.s32.totalorder %s15, 1
      %p66 = scmp.ne.s32.totalorder %s61, %s63
      %p67 = scmp.eq.s32.totalorder %s15, 0
      %p68 = por %p66, %p67
      %p69 = scmp.ne.s32.totalorder %s61, %s63
      %p70 = scmp.eq.s32.totalorder %s20, 1
      %p71 = por %p69, %p70
      %p72 = scmp.ne.s32.totalorder %s63, %s64
      %p73 = scmp.eq.s32.totalorder %s20, 0
      %p74 = por %p72, %p73
      %p75 = scmp.ne.s32.totalorder %s63, %s64
      %p76 = scmp.eq.s32.totalorder %s21, 1
      %p77 = por %p75, %p76
      %p79 = scmp.ne.s32.totalorder %s64, %s78
      %p80 = scmp.eq.s32.totalorder %s21, 0
      %p81 = por %p79, %p80
      %s83 = sadd.s32 %s82, 1
      %p86 = scmp.eq.s32.totalorder %s15, 1
      %p87 = scmp.ne.s32.totalorder %s82, %s84
      %p88 = scmp.eq.s32.totalorder %s15, 0
      %p89 = por %p87, %p88
      %p90 = scmp.ne.s32.totalorder %s82, %s84
      %p91 = scmp.eq.s32.totalorder %s20, 1
      %p92 = por %p90, %p91
      %p93 = scmp.ne.s32.totalorder %s84, %s85
      %p94 = scmp.eq.s32.totalorder %s20, 0
      %p95 = por %p93, %p94
      %p96 = scmp.ne.s32.totalorder %s84, %s85
      %p97 = scmp.eq.s32.totalorder %s21, 1
      %p98 = por %p96, %p97
      %p100 = scmp.ne.s32.totalorder %s85, %s99
      %p101 = scmp.eq.s32.totalorder %s21, 0
      %p102 = por %p100, %p101
      %s104 = sadd.s32 %s103, 1
      %p107 = scmp.eq.s32.totalorder %s15, 1
      %p108 = scmp.ne.s32.totalorder %s103, %s105
      %p109 = scmp.eq.s32.totalorder %s15, 0
      %p110 = por %p108, %p109
      %p111 = scmp.ne.s32.totalorder %s103, %s105
      %p112 = scmp.eq.s32.totalorder %s20, 1
      %p113 = por %p111, %p112
      %p114 = scmp.ne.s32.totalorder %s105, %s106
      %p115 = scmp.eq.s32.totalorder %s20, 0
      %p116 = por %p114, %p115
      %p117 = scmp.ne.s32.totalorder %s105, %s106
      %p118 = scmp.eq.s32.totalorder %s21, 1
      %p119 = por %p117, %p118
      %p121 = scmp.ne.s32.totalorder %s106, %s120
      %p122 = scmp.eq.s32.totalorder %s21, 0
      %p123 = por %p121, %p122
      %s124 = ssub.s32 %s23, %s30
      %p125 = scmp.eq.s32.totalorder %s124, 0
      %s127 = sadd.s32 %s126, 1
      %s128 = scalar_select %p125, %s126, %s127
      %p131 = pneg %p125
      %p132 = scmp.eq.s32.totalorder %s15, 1
      %p133 = por %p131, %p132
      %p134 = scmp.ne.s32.totalorder %s126, %s129
      %p135 = scmp.eq.s32.totalorder %s15, 0
      %p136 = por %p134, %p135
      %p137 = scmp.ne.s32.totalorder %s126, %s129
      %p138 = scmp.eq.s32.totalorder %s20, 1
      %p139 = por %p137, %p138
      %p140 = scmp.ne.s32.totalorder %s129, %s130
      %p141 = scmp.eq.s32.totalorder %s20, 0
      %p142 = por %p140, %p141
      %p143 = scmp.ne.s32.totalorder %s129, %s130
      %p144 = scmp.eq.s32.totalorder %s21, 1
      %p145 = por %p143, %p144
      %p147 = scmp.ne.s32.totalorder %s130, %s146
      %p148 = scmp.eq.s32.totalorder %s21, 0
      %p149 = por %p147, %p148
      %s151 = sadd.s32 %s150, 1
      %p154 = scmp.eq.s32.totalorder %s15, 1
      %p155 = scmp.ne.s32.totalorder %s150, %s152
      %p156 = scmp.eq.s32.totalorder %s15, 0
      %p157 = por %p155, %p156
      %p158 = scmp.ne.s32.totalorder %s150, %s152
      %p159 = scmp.eq.s32.totalorder %s20, 1
      %p160 = por %p158, %p159
      %p161 = scmp.ne.s32.totalorder %s152, %s153
      %p162 = scmp.eq.s32.totalorder %s20, 0
      %p163 = por %p161, %p162
      %p164 = scmp.ne.s32.totalorder %s152, %s153
      %p165 = scmp.eq.s32.totalorder %s21, 1
      %p166 = por %p164, %p165
      %p168 = scmp.ne.s32.totalorder %s153, %s167
      %p169 = scmp.eq.s32.totalorder %s21, 0
      %p170 = por %p168, %p169
      %s171 = ssub.s32 %s22, %s34
      %s172 = ssub.s32 %s23, %s30
      %s173 = sor.u32 %s171, %s172
      %p174 = scmp.eq.s32.totalorder %s173, 0
      %s176 = sadd.s32 %s175, 1
      %s177 = scalar_select %p174, %s175, %s176
      %p180 = pneg %p174
      %p181 = scmp.eq.s32.totalorder %s15, 1
      %p182 = por %p180, %p181
      %p183 = scmp.ne.s32.totalorder %s175, %s178
      %p184 = scmp.eq.s32.totalorder %s15, 0
      %p185 = por %p183, %p184
      %p186 = scmp.ne.s32.totalorder %s175, %s178
      %p187 = scmp.eq.s32.totalorder %s20, 1
      %p188 = por %p186, %p187
      %p189 = scmp.ne.s32.totalorder %s178, %s179
      %p190 = scmp.eq.s32.totalorder %s20, 0
      %p191 = por %p189, %p190
      %p192 = scmp.ne.s32.totalorder %s178, %s179
      %p193 = scmp.eq.s32.totalorder %s21, 1
      %p194 = por %p192, %p193
      %p196 = scmp.ne.s32.totalorder %s179, %s195
      %p197 = scmp.eq.s32.totalorder %s21, 0
      %p198 = por %p196, %p197
      %p199 = scmp.le.s32.totalorder 1, %s15
      %p200 = scmp.lt.s32.totalorder %s15, 3
      %p201 = pnand %p199, %p200
      %p202 = pneg %p201
      // Predicated region
      $region9: #{tpu_custom_call.1} parent=5 // pred_check
        _
      $region10: #{tpu_custom_call.1} parent=5 // pred_check_branch
        %204 = sbr.rel (%p201) target = $region12
      $region11: #{tpu_custom_call.1} parent=5 // pred_region
        %s205 = ssub.s32 %s15, 1
        // Predicated region
        $region13: #{tpu_custom_call.1} parent=11 // pred_check
          %p206 = pneg %p74
        $region14: #{tpu_custom_call.1} parent=11 // pred_check_branch
          %208 = sbr.rel (%p206) target = $region16
        $region15: #{tpu_custom_call.1} parent=11 // pred_region
          _
        $region16: #{tpu_custom_call.1} parent=11 // pred_fallthru
          _
        // Predicated region
        $region17: #{tpu_custom_call.1} parent=11 // pred_check
          %p209 = pneg %p95
        $region18: #{tpu_custom_call.1} parent=11 // pred_check_branch
          %211 = sbr.rel (%p209) target = $region20
        $region19: #{tpu_custom_call.1} parent=11 // pred_region
          _
        $region20: #{tpu_custom_call.1} parent=11 // pred_fallthru
          _
        // Predicated region
        $region21: #{tpu_custom_call.1} parent=11 // pred_check
          %p212 = pneg %p116
        $region22: #{tpu_custom_call.1} parent=11 // pred_check_branch
          %214 = sbr.rel (%p212) target = $region24
        $region23: #{tpu_custom_call.1} parent=11 // pred_region
          _
        $region24: #{tpu_custom_call.1} parent=11 // pred_fallthru
          _
        // Predicated region
        $region25: #{tpu_custom_call.1} parent=11 // pred_check
          %p215 = pneg %p142
        $region26: #{tpu_custom_call.1} parent=11 // pred_check_branch
          %217 = sbr.rel (%p215) target = $region28
        $region27: #{tpu_custom_call.1} parent=11 // pred_region
          %s218 = smul.u32 32, %s25
          %p219 = scmp.lt.s32.totalorder %s218, 31
          %s220 = scalar_select %p219, %s218, 31
          %s221 = smul.addr %s220, 4
          %s222 = scalar_lea.vmem %s4, %s221
          %s223 = smul.u32 32, %s25
        $region28: #{tpu_custom_call.1} parent=11 // pred_fallthru
          _
        // Predicated region
        $region29: #{tpu_custom_call.1} parent=11 // pred_check
          %p224 = pneg %p163
        $region30: #{tpu_custom_call.1} parent=11 // pred_check_branch
          %226 = sbr.rel (%p224) target = $region32
        $region31: #{tpu_custom_call.1} parent=11 // pred_region
          _
        $region32: #{tpu_custom_call.1} parent=11 // pred_fallthru
          _
      $region12: #{tpu_custom_call.1} parent=5 // pred_fallthru
        _
      %p227 = scmp.lt.s32.totalorder %s15, 2
      // Predicated region
      $region33: #{tpu_custom_call.1} parent=5 // pred_check
        %p228 = pneg %p227
      $region34: #{tpu_custom_call.1} parent=5 // pred_check_branch
        %230 = sbr.rel (%p228) target = $region36
      $region35: #{tpu_custom_call.1} parent=5 // pred_region
        // Predicated region
        $region37: #{tpu_custom_call.1} parent=35 // pred_check
          %p231 = pneg %p47
        $region38: #{tpu_custom_call.1} parent=35 // pred_check_branch
          %233 = sbr.rel (%p231) target = $region40
        $region39: #{tpu_custom_call.1} parent=35 // pred_region
          %p234 = scmp.lt.s32.totalorder %s22, 1
          %s235 = scalar_select %p234, %s22, 1
          %s236 = smul.addr %s235, 32
          %s237 = smul.addr %s236, 4
          %s238 = scalar_lea.vmem %s0, %s237
        $region40: #{tpu_custom_call.1} parent=35 // pred_fallthru
          _
      $region36: #{tpu_custom_call.1} parent=5 // pred_fallthru
        _
      %p239 = scmp.le.s32.totalorder 1, %s15
      %p240 = scmp.lt.s32.totalorder %s15, 3
      %p241 = pnand %p239, %p240
      %p242 = pneg %p241
      // Predicated region
      $region41: #{tpu_custom_call.1} parent=5 // pred_check
        _
      $region42: #{tpu_custom_call.1} parent=5 // pred_check_branch
        %244 = sbr.rel (%p241) target = $region44
      $region43: #{tpu_custom_call.1} parent=5 // pred_region
        %s245 = ssub.s32 %s15, 1
        %p246 = scmp.lt.s32.totalorder %s24, 1
        %s247 = scalar_select %p246, %s24, 1
        %s248 = smul.addr %s247, 32
        %s249 = smul.addr %s248, 4
        %s250 = scalar_lea.vmem %s0, %s249
        %p251 = pneg %p53
        %p252 = pneg %p50
        %p253 = pneg %p74
        %p254 = pneg %p71
        %p255 = pneg %p95
        %p256 = pneg %p92
        %p257 = pneg %p116
        %p258 = pneg %p113
        %s259 = smul.u32 32, %s25
        %p260 = scmp.lt.s32.totalorder %s259, 31
        %s261 = scalar_select %p260, %s259, 31
        %s262 = smul.addr %s261, 4
        %s263 = scalar_lea.vmem %s4, %s262
        %p264 = pneg %p142
        %p265 = pneg %p139
        %p266 = pneg %p163
        %p267 = pneg %p160
        %p268 = pneg %p191
        %p269 = pneg %p188
        %s270 = sand.u32 %s178, 1
        %s271 = scalar_lea.sflag [#allocation4], %s270
        %s272 = sand.u32 %s178, 1
        %s273 = smul.addr %s272, 128
        %s274 = scalar_lea.vmem [#allocation3], %s273
        %p275 = scmp.lt.s32.totalorder %s24, 1
        %s276 = scalar_select %p275, %s24, 1
        %s277 = smul.addr %s276, 32
        %s278 = smul.addr %s277, 4
        %s279 = scalar_lea.vmem %s0, %s278
        %s280 = smul.u32 32, %s25
        %p281 = scmp.lt.s32.totalorder %s280, 31
        %s282 = scalar_select %p281, %s280, 31
        %s283 = smul.addr %s282, 4
        %s284 = scalar_lea.vmem %s4, %s283
        %s285 = smul.u32 32, %s25
        %s286 = smul.u32 32, %s25
        %p288 = scmp.eq.s32.totalorder %s25, 0
        // Predicated region
        $region45: #{tpu_custom_call.1} parent=43 // pred_check
          %p289 = pneg %p288
        $region46: #{tpu_custom_call.1} parent=43 // pred_check_branch
          %291 = sbr.rel (%p289) target = $region48
        $region47: #{tpu_custom_call.1} parent=43 // pred_region
          %v292 = vld [vmem:[%s279] sm:$0xf]
          %v293 = vld [vmem:[%s279 + $0x4] sm:$0xf]
          %v294 = vld [vmem:[%s279 + $0x8] sm:$0xf]
          %v295 = vld [vmem:[%s279 + $0xc] sm:$0xf]
          %v296 = vld [vmem:[%s279 + $0x10] sm:$0xf]
          %v297 = vld [vmem:[%s279 + $0x14] sm:$0xf]
          %v298 = vld [vmem:[%s279 + $0x18] sm:$0xf]
          %v299 = vld [vmem:[%s279 + $0x1c] sm:$0xf]
          %v300 = vld [vmem:[%s279 + $0x20] sm:$0xf]
          %v301 = vld [vmem:[%s279 + $0x24] sm:$0xf]
          %v302 = vld [vmem:[%s279 + $0x28] sm:$0xf]
          %v303 = vld [vmem:[%s279 + $0x2c] sm:$0xf]
          %v304 = vld [vmem:[%s279 + $0x30] sm:$0xf]
          %v305 = vld [vmem:[%s279 + $0x34] sm:$0xf]
          %v306 = vld [vmem:[%s279 + $0x38] sm:$0xf]
          %v307 = vld [vmem:[%s279 + $0x3c] sm:$0xf]
          %v308 = vld [vmem:[%s279 + $0x40] sm:$0xf]
          %v309 = vld [vmem:[%s279 + $0x44] sm:$0xf]
          %v310 = vld [vmem:[%s279 + $0x48] sm:$0xf]
          %v311 = vld [vmem:[%s279 + $0x4c] sm:$0xf]
          %v312 = vld [vmem:[%s279 + $0x50] sm:$0xf]
          %v313 = vld [vmem:[%s279 + $0x54] sm:$0xf]
          %v314 = vld [vmem:[%s279 + $0x58] sm:$0xf]
          %v315 = vld [vmem:[%s279 + $0x5c] sm:$0xf]
          %v316 = vld [vmem:[%s279 + $0x60] sm:$0xf]
          %v317 = vld [vmem:[%s279 + $0x64] sm:$0xf]
          %v318 = vld [vmem:[%s279 + $0x68] sm:$0xf]
          %v319 = vld [vmem:[%s279 + $0x6c] sm:$0xf]
          %v320 = vld [vmem:[%s279 + $0x70] sm:$0xf]
          %v321 = vld [vmem:[%s279 + $0x74] sm:$0xf]
          %v322 = vld [vmem:[%s279 + $0x78] sm:$0xf]
          %v323 = vld [vmem:[%s279 + $0x7c] sm:$0xf]
          %v324 = vld [vmem:[%s1] sm:$0xff]
          %v325 = vld [vmem:[%s1 + $0x8] sm:$0xff]
          %v326 = vld [vmem:[%s1 + $0x10] sm:$0xff]
          %v327 = vld [vmem:[%s1 + $0x18] sm:$0xff]
          %v328 = vld [vmem:[%s1 + $0x20] sm:$0xff]
          %v329 = vld [vmem:[%s1 + $0x28] sm:$0xff]
          %v330 = vld [vmem:[%s1 + $0x30] sm:$0x11]
          %v338 = vunpack.c.l.b16 %v324
          %v339 = vunpack.c.h.b16 %v324
          %v340 = vunpack.c.l.b16 %v325
          %v341 = vunpack.c.h.b16 %v325
          %v342 = vunpack.c.l.b16 %v326
          %v343 = vunpack.c.h.b16 %v326
          %v344 = vunpack.c.l.b16 %v327
          %v345 = vunpack.c.h.b16 %v327
          %v346 = vunpack.c.l.b16 %v328
          %v347 = vunpack.c.h.b16 %v328
          %v348 = vunpack.c.l.b16 %v329
          %v349 = vunpack.c.h.b16 %v329
          %v350 = vunpack.c.l.b16 %v330
          %v351 = vunpack.c.h.b16 %v330
          %v352 = vpack.c.b16 %v340, %v338
          %v353 = vpack.c.b16 %v341, %v339
          %v354 = vpack.c.b16 %v344, %v342
          %v355 = vpack.c.b16 %v345, %v343
          %v356 = vpack.c.b16 %v348, %v346
          %v357 = vpack.c.b16 %v349, %v347
          %v358 = vpack.c.b16 %v350, %v350
          %v359 = vpack.c.b16 %v351, %v351
          %v400 = vunpack.c.l.b16 %v292
          %v401 = vunpack.c.l.b16 %v293
          %v402 = vunpack.c.l.b16 %v294
          %v403 = vunpack.c.l.b16 %v295
          %v404 = vunpack.c.l.b16 %v296
          %v405 = vunpack.c.l.b16 %v297
          %v406 = vunpack.c.l.b16 %v298
          %v407 = vunpack.c.l.b16 %v299
          %v408 = vunpack.c.l.b16 %v300
          %v409 = vunpack.c.l.b16 %v301
          %v410 = vunpack.c.l.b16 %v302
          %v411 = vunpack.c.l.b16 %v303
          %v412 = vunpack.c.l.b16 %v304
          %v413 = vunpack.c.l.b16 %v305
          %v414 = vunpack.c.l.b16 %v306
          %v415 = vunpack.c.l.b16 %v307
          %v416 = vunpack.c.l.b16 %v308
          %v417 = vunpack.c.l.b16 %v309
          %v418 = vunpack.c.l.b16 %v310
          %v419 = vunpack.c.l.b16 %v311
          %v420 = vunpack.c.l.b16 %v312
          %v421 = vunpack.c.l.b16 %v313
          %v422 = vunpack.c.l.b16 %v314
          %v423 = vunpack.c.l.b16 %v315
          %v424 = vunpack.c.l.b16 %v316
          %v425 = vunpack.c.l.b16 %v317
          %v426 = vunpack.c.l.b16 %v318
          %v427 = vunpack.c.l.b16 %v319
          %v428 = vunpack.c.l.b16 %v320
          %v429 = vunpack.c.l.b16 %v321
          %v430 = vunpack.c.l.b16 %v322
          %v431 = vunpack.c.l.b16 %v323
          %v432 = vpack.c.b16 %v401, %v400
          %v433 = vpack.c.b16 %v403, %v402
          %v434 = vpack.c.b16 %v405, %v404
          %v435 = vpack.c.b16 %v407, %v406
          %v436 = vpack.c.b16 %v409, %v408
          %v437 = vpack.c.b16 %v411, %v410
          %v438 = vpack.c.b16 %v413, %v412
          %v439 = vpack.c.b16 %v415, %v414
          %v440 = vpack.c.b16 %v417, %v416
          %v441 = vpack.c.b16 %v419, %v418
          %v442 = vpack.c.b16 %v421, %v420
          %v443 = vpack.c.b16 %v423, %v422
          %v444 = vpack.c.b16 %v425, %v424
          %v445 = vpack.c.b16 %v427, %v426
          %v446 = vpack.c.b16 %v429, %v428
          %v447 = vpack.c.b16 %v431, %v430
          %464 = vmatprep.subr.bf16.mxu0 0
          %465 = vmatpush1.bf16.msra.mxu0 %v439
          %466 = vmatprep.subr.bf16.mxu0 0
          %467 = vmatpush1.bf16.msra.mxu0 %v438
          %468 = vmatprep.subr.bf16.mxu0 0
          %469 = vmatpush1.bf16.msra.mxu0 %v437
          %470 = vmatprep.subr.bf16.mxu0 0
          %471 = vmatpush1.bf16.msra.mxu0 %v436
          %472 = vmatprep.subr.bf16.mxu0 0
          %473 = vmatpush1.bf16.msra.mxu0 %v435
          %474 = vmatprep.subr.bf16.mxu0 0
          %475 = vmatpush1.bf16.msra.mxu0 %v434
          %476 = vmatprep.subr.bf16.mxu0 0
          %477 = vmatpush1.bf16.msra.mxu0 %v433
          %478 = vmatprep.subr.bf16.mxu0 0
          %479 = vmatpush1.bf16.msra.mxu0 %v432
          %480 = vmatprep.subr.bf16.mxu0 0
          %481 = vmatpush2.bf16.msra.mxu0 %v447
          %482 = vmatprep.subr.bf16.mxu0 0
          %483 = vmatpush2.bf16.msra.mxu0 %v446
          %484 = vmatprep.subr.bf16.mxu0 0
          %485 = vmatpush2.bf16.msra.mxu0 %v445
          %486 = vmatprep.subr.bf16.mxu0 0
          %487 = vmatpush2.bf16.msra.mxu0 %v444
          %488 = vmatprep.subr.bf16.mxu0 0
          %489 = vmatpush2.bf16.msra.mxu0 %v443
          %490 = vmatprep.subr.bf16.mxu0 0
          %491 = vmatpush2.bf16.msra.mxu0 %v442
          %492 = vmatprep.subr.bf16.mxu0 0
          %493 = vmatpush2.bf16.msra.mxu0 %v441
          %494 = vmatprep.subr.bf16.mxu0 0
          %495 = vmatpush2.bf16.msra.mxu0 %v440
          %496 = vmatprep.mubr.bf16.mxu0 %v353
          %497 = vmatmul.mubr.bf16.gmra.mxu0 %v352
          %v498 = vpop.f32.mrf.mxu0
          %v499 = vadd.f32 0.0, %v498
          %v500 = vpop.f32.mrf.mxu0
          %v501 = vpop.f32.mrf.mxu0
          %v502 = vadd.f32 0.0, %v501
          %v503 = vpop.f32.mrf.mxu0
          %504 = vmatprep.mubr.bf16.mxu0 %v355
          %505 = vmatmul.mubr.bf16.gmra.mxu0 %v354
          %v506 = vpop.f32.mrf.mxu0
          %v507 = vadd.f32 0.0, %v506
          %v508 = vpop.f32.mrf.mxu0
          %v509 = vpop.f32.mrf.mxu0
          %v510 = vadd.f32 0.0, %v509
          %v511 = vpop.f32.mrf.mxu0
          %512 = vmatprep.mubr.bf16.mxu0 %v357
          %513 = vmatmul.mubr.bf16.gmra.mxu0 %v356
          %v514 = vpop.f32.mrf.mxu0
          %v515 = vadd.f32 0.0, %v514
          %v516 = vpop.f32.mrf.mxu0
          %v517 = vpop.f32.mrf.mxu0
          %v518 = vadd.f32 0.0, %v517
          %v519 = vpop.f32.mrf.mxu0
          %520 = vmatprep.mubr.bf16.mxu0 %v359
          %521 = vmatmul.mubr.bf16.gmra.mxu0 %v358
          %v522 = vpop.f32.mrf.mxu0
          %v523 = vadd.f32 0.0, %v522
          %v524 = vpop.f32.mrf.mxu0
          %v525 = vpop.f32.mrf.mxu0
          %v526 = vpop.f32.mrf.mxu0
          %527 = vdwg.mxu0
          %v528 = vpack.c.bf16 %v502, %v499
          %v529 = vpack.c.bf16 %v510, %v507
          %v530 = vpack.c.bf16 %v518, %v515
          %v531 = vpack.c.bf16 %v523, %v523
          %v532 = vld [vmem:[%s2] sm:$0x3]
          %vm533 = vcmask 31744
          %v535 = vsel %vm533, %v528, 0
          %v538 = vsel %vm533, %v529, 0
          %v541 = vsel %vm533, %v530, 0
          %v544 = vsel %vm533, %v531, 0
          %vm546 = vcmask 1041408
          %v548 = vsel %vm546, %v532, 0
          %550 = vmatprep.subr.bf16.mxu0 0
          %551 = vmatpush1.bf16.msra.mxu0 0
          %552 = vmatprep.subr.bf16.mxu0 0
          %553 = vmatpush1.bf16.msra.mxu0 0
          %554 = vmatprep.subr.bf16.mxu0 0
          %555 = vmatpush1.bf16.msra.mxu0 0
          %556 = vmatprep.subr.bf16.mxu0 0
          %557 = vmatpush1.bf16.msra.mxu0 0
          %558 = vmatprep.subr.bf16.mxu0 0
          %559 = vmatpush1.bf16.msra.mxu0 0
          %560 = vmatprep.subr.bf16.mxu0 0
          %561 = vmatpush1.bf16.msra.mxu0 0
          %562 = vmatprep.subr.bf16.mxu0 0
          %563 = vmatpush1.bf16.msra.mxu0 0
          %564 = vmatprep.subr.bf16.mxu0 0
          %565 = vmatpush1.bf16.msra.mxu0 %v548
          %566 = vmatprep.subr.bf16.mxu0 0
          %567 = vmatpush2.bf16.msra.mxu0 0
          %568 = vmatprep.subr.bf16.mxu0 0
          %569 = vmatpush2.bf16.msra.mxu0 0
          %570 = vmatprep.subr.bf16.mxu0 0
          %571 = vmatpush2.bf16.msra.mxu0 0
          %572 = vmatprep.subr.bf16.mxu0 0
          %573 = vmatpush2.bf16.msra.mxu0 0
          %574 = vmatprep.subr.bf16.mxu0 0
          %575 = vmatpush2.bf16.msra.mxu0 0
          %576 = vmatprep.subr.bf16.mxu0 0
          %577 = vmatpush2.bf16.msra.mxu0 0
          %578 = vmatprep.subr.bf16.mxu0 0
          %579 = vmatpush2.bf16.msra.mxu0 0
          %580 = vmatprep.subr.bf16.mxu0 0
          %581 = vmatpush2.bf16.msra.mxu0 0
          %582 = vmatprep.mubr.bf16.mxu0 0
          %583 = vmatmul.mubr.bf16.gmra.mxu0 %v535
          %v584 = vpop.f32.mrf.mxu0
          %v585 = vadd.f32 0.0, %v584
          %v586 = vpop.f32.mrf.mxu0
          %v587 = vpop.f32.mrf.mxu0
          %v588 = vadd.f32 0.0, %v587
          %v589 = vpop.f32.mrf.mxu0
          %590 = vmatprep.mubr.bf16.mxu0 0
          %591 = vmatmul.mubr.bf16.gmra.mxu0 %v538
          %v592 = vpop.f32.mrf.mxu0
          %v593 = vadd.f32 0.0, %v592
          %v594 = vpop.f32.mrf.mxu0
          %v595 = vpop.f32.mrf.mxu0
          %v596 = vadd.f32 0.0, %v595
          %v597 = vpop.f32.mrf.mxu0
          %598 = vmatprep.mubr.bf16.mxu0 0
          %599 = vmatmul.mubr.bf16.gmra.mxu0 %v541
          %v600 = vpop.f32.mrf.mxu0
          %v601 = vadd.f32 0.0, %v600
          %v602 = vpop.f32.mrf.mxu0
          %v603 = vpop.f32.mrf.mxu0
          %v604 = vadd.f32 0.0, %v603
          %v605 = vpop.f32.mrf.mxu0
          %606 = vmatprep.mubr.bf16.mxu0 0
          %607 = vmatmul.mubr.bf16.gmra.mxu0 %v544
          %v608 = vpop.f32.mrf.mxu0
          %v609 = vadd.f32 0.0, %v608
          %v610 = vpop.f32.mrf.mxu0
          %v611 = vpop.f32.mrf.mxu0
          %v612 = vpop.f32.mrf.mxu0
          %613 = vdwg.mxu0
          %v614 = vld [vmem:[%s3] sm:$0xff]
          %v615 = vld [vmem:[%s3 + $0x8] sm:$0xff]
          %v616 = vld [vmem:[%s3 + $0x10] sm:$0xff]
          %v617 = vld [vmem:[%s3 + $0x18] sm:$0xff]
          %v618 = vld [vmem:[%s3 + $0x20] sm:$0xff]
          %v619 = vld [vmem:[%s3 + $0x28] sm:$0xff]
          %v620 = vld [vmem:[%s3 + $0x30] sm:$0x3]
          %v621 = vmul.f32 %v585, %v614
          %v622 = vmul.f32 %v588, %v615
          %v623 = vmul.f32 %v593, %v616
          %v624 = vmul.f32 %v596, %v617
          %v625 = vmul.f32 %v601, %v618
          %v626 = vmul.f32 %v604, %v619
          %v627 = vmul.f32 %v609, %v620
          %v628 = vpack.c.bf16 %v622, %v621
          %v629 = vpack.c.bf16 %v624, %v623
          %v630 = vpack.c.bf16 %v626, %v625
          %v631 = vpack.c.bf16 %v627, %v627
          %v636 = vunpack.c.l.b16 %v628
          %v637 = vunpack.c.h.b16 %v628
          %v638 = vunpack.c.l.b16 %v629
          %v639 = vunpack.c.h.b16 %v629
          %v640 = vunpack.c.l.b16 %v630
          %v641 = vunpack.c.h.b16 %v630
          %v642 = vunpack.c.l.b16 %v631
          %v643 = vpack.c.b16 %v636, %v636
          %v644 = vpack.c.b16 %v637, %v637
          %v645 = vpack.c.b16 %v638, %v638
          %v646 = vpack.c.b16 %v639, %v639
          %v647 = vpack.c.b16 %v640, %v640
          %v648 = vpack.c.b16 %v641, %v641
          %v649 = vpack.c.b16 %v642, %v642
          %657 = vst [vmem:[#allocation2] sm:$0xf] %v643
          %658 = vst [vmem:[#allocation2 + $0x4] sm:$0xf] %v644
          %659 = vst [vmem:[#allocation2 + $0x8] sm:$0xf] %v645
          %660 = vst [vmem:[#allocation2 + $0xc] sm:$0xf] %v646
          %661 = vst [vmem:[#allocation2 + $0x10] sm:$0xf] %v647
          %662 = vst [vmem:[#allocation2 + $0x14] sm:$0xf] %v648
          %663 = vst [vmem:[#allocation2 + $0x18] sm:$0x1] %v649
        $region48: #{tpu_custom_call.1} parent=43 // pred_fallthru
          _
        %v664 = vld [vmem:[%s284] sm:$0xf]
        %v665 = vld [vmem:[%s284 + $0x4] sm:$0xf]
        %v666 = vld [vmem:[%s284 + $0x8] sm:$0xf]
        %v667 = vld [vmem:[%s284 + $0xc] sm:$0xf]
        %v668 = vld [vmem:[%s284 + $0x10] sm:$0xf]
        %v669 = vld [vmem:[%s284 + $0x14] sm:$0xf]
        %v670 = vld [vmem:[%s284 + $0x18] sm:$0xf]
        %v671 = vld [vmem:[%s284 + $0x1c] sm:$0xf]
        %v672 = vld [vmem:[%s284 + $0x20] sm:$0xf]
        %v673 = vld [vmem:[%s284 + $0x24] sm:$0xf]
        %v674 = vld [vmem:[%s284 + $0x28] sm:$0xf]
        %v675 = vld [vmem:[%s284 + $0x2c] sm:$0xf]
        %v676 = vld [vmem:[%s284 + $0x30] sm:$0xf]
        %v677 = vld [vmem:[%s284 + $0x34] sm:$0xf]
        %v678 = vld [vmem:[%s284 + $0x38] sm:$0xf]
        %v679 = vld [vmem:[%s284 + $0x3c] sm:$0xf]
        %v680 = vld [vmem:[%s284 + $0x40] sm:$0xf]
        %v681 = vld [vmem:[%s284 + $0x44] sm:$0xf]
        %v682 = vld [vmem:[%s284 + $0x48] sm:$0xf]
        %v683 = vld [vmem:[%s284 + $0x4c] sm:$0xf]
        %v684 = vld [vmem:[%s284 + $0x50] sm:$0xf]
        %v685 = vld [vmem:[%s284 + $0x54] sm:$0xf]
        %v686 = vld [vmem:[%s284 + $0x58] sm:$0xf]
        %v687 = vld [vmem:[%s284 + $0x5c] sm:$0xf]
        %v688 = vld [vmem:[%s284 + $0x60] sm:$0xf]
        %v689 = vld [vmem:[%s284 + $0x64] sm:$0xf]
        %v690 = vld [vmem:[%s284 + $0x68] sm:$0xf]
        %v691 = vld [vmem:[%s284 + $0x6c] sm:$0xf]
        %v692 = vld [vmem:[%s284 + $0x70] sm:$0xf]
        %v693 = vld [vmem:[%s284 + $0x74] sm:$0xf]
        %v694 = vld [vmem:[%s284 + $0x78] sm:$0xf]
        %v695 = vld [vmem:[%s284 + $0x7c] sm:$0xf]
        %v696 = vld [vmem:[#allocation2] sm:$0xf]
        %v697 = vld [vmem:[#allocation2 + $0x4] sm:$0xf]
        %v698 = vld [vmem:[#allocation2 + $0x8] sm:$0xf]
        %v699 = vld [vmem:[#allocation2 + $0xc] sm:$0xf]
        %v700 = vld [vmem:[#allocation2 + $0x10] sm:$0xf]
        %v701 = vld [vmem:[#allocation2 + $0x14] sm:$0xf]
        %v702 = vld [vmem:[#allocation2 + $0x18] sm:$0x1]
        %v703 = vld [vmem:[%s5] sm:$0x1]
        %v705 = vlaneseq
        %v706 = vshrl.u32 %v705, 7
        %v707 = vsub.s32 0, %v706
        %v708 = vrot.slane %v703, %v707
        %v742 = vunpack.c.l.b16 %v664
        %v743 = vunpack.c.l.b16 %v665
        %v744 = vunpack.c.l.b16 %v666
        %v745 = vunpack.c.l.b16 %v667
        %v746 = vunpack.c.l.b16 %v668
        %v747 = vunpack.c.l.b16 %v669
        %v748 = vunpack.c.l.b16 %v670
        %v749 = vunpack.c.l.b16 %v671
        %v750 = vunpack.c.l.b16 %v672
        %v751 = vunpack.c.l.b16 %v673
        %v752 = vunpack.c.l.b16 %v674
        %v753 = vunpack.c.l.b16 %v675
        %v754 = vunpack.c.l.b16 %v676
        %v755 = vunpack.c.l.b16 %v677
        %v756 = vunpack.c.l.b16 %v678
        %v757 = vunpack.c.l.b16 %v679
        %v758 = vunpack.c.l.b16 %v680
        %v759 = vunpack.c.l.b16 %v681
        %v760 = vunpack.c.l.b16 %v682
        %v761 = vunpack.c.l.b16 %v683
        %v762 = vunpack.c.l.b16 %v684
        %v763 = vunpack.c.l.b16 %v685
        %v764 = vunpack.c.l.b16 %v686
        %v765 = vunpack.c.l.b16 %v687
        %v766 = vunpack.c.l.b16 %v688
        %v767 = vunpack.c.l.b16 %v689
        %v768 = vunpack.c.l.b16 %v690
        %v769 = vunpack.c.l.b16 %v691
        %v770 = vunpack.c.l.b16 %v692
        %v771 = vunpack.c.l.b16 %v693
        %v772 = vunpack.c.l.b16 %v694
        %v773 = vunpack.c.l.b16 %v695
        %v774 = vpack.c.b16 %v743, %v742
        %v775 = vpack.c.b16 %v745, %v744
        %v776 = vpack.c.b16 %v747, %v746
        %v777 = vpack.c.b16 %v749, %v748
        %v778 = vpack.c.b16 %v751, %v750
        %v779 = vpack.c.b16 %v753, %v752
        %v780 = vpack.c.b16 %v755, %v754
        %v781 = vpack.c.b16 %v757, %v756
        %v782 = vpack.c.b16 %v759, %v758
        %v783 = vpack.c.b16 %v761, %v760
        %v784 = vpack.c.b16 %v763, %v762
        %v785 = vpack.c.b16 %v765, %v764
        %v786 = vpack.c.b16 %v767, %v766
        %v787 = vpack.c.b16 %v769, %v768
        %v788 = vpack.c.b16 %v771, %v770
        %v789 = vpack.c.b16 %v773, %v772
        %v797 = vunpack.c.l.b16 %v696
        %v798 = vunpack.c.l.b16 %v697
        %v799 = vunpack.c.l.b16 %v698
        %v800 = vunpack.c.l.b16 %v699
        %v801 = vunpack.c.l.b16 %v700
        %v802 = vunpack.c.l.b16 %v701
        %v803 = vunpack.c.l.b16 %v702
        %v804 = vpack.c.b16 %v798, %v797
        %v805 = vpack.c.b16 %v800, %v799
        %v806 = vpack.c.b16 %v802, %v801
        %v807 = vpack.c.b16 %v803, %v803
        %vm811 = vcmask 408576
        %v813 = vsel %vm811, %v774, 0
        %v816 = vsel %vm811, %v775, 0
        %v819 = vsel %vm811, %v776, 0
        %v822 = vsel %vm811, %v777, 0
        %v825 = vsel %vm811, %v778, 0
        %v828 = vsel %vm811, %v779, 0
        %v831 = vsel %vm811, %v780, 0
        %v834 = vsel %vm811, %v781, 0
        %v837 = vsel %vm811, %v782, 0
        %v840 = vsel %vm811, %v783, 0
        %v843 = vsel %vm811, %v784, 0
        %v846 = vsel %vm811, %v785, 0
        %v849 = vsel %vm811, %v786, 0
        %v852 = vsel %vm811, %v787, 0
        %v855 = vsel %vm811, %v788, 0
        %v858 = vsel %vm811, %v789, 0
        %vm860 = vcmask 1040384
        %v862 = vsel %vm860, %v807, 0
        %864 = vmatprep.subr.bf16.mxu0 0
        %865 = vmatpush1.bf16.msra.mxu0 0
        %866 = vmatprep.subr.bf16.mxu0 0
        %867 = vmatpush1.bf16.msra.mxu0 0
        %868 = vmatprep.subr.bf16.mxu0 0
        %869 = vmatpush1.bf16.msra.mxu0 0
        %870 = vmatprep.subr.bf16.mxu0 0
        %871 = vmatpush1.bf16.msra.mxu0 0
        %872 = vmatprep.subr.bf16.mxu0 0
        %873 = vmatpush1.bf16.msra.mxu0 %v862
        %874 = vmatprep.subr.bf16.mxu0 0
        %875 = vmatpush1.bf16.msra.mxu0 %v806
        %876 = vmatprep.subr.bf16.mxu0 0
        %877 = vmatpush1.bf16.msra.mxu0 %v805
        %878 = vmatprep.subr.bf16.mxu0 0
        %879 = vmatpush1.bf16.msra.mxu0 %v804
        %880 = vmatprep.subr.bf16.mxu0 0
        %881 = vmatpush2.bf16.msra.mxu0 0
        %882 = vmatprep.subr.bf16.mxu0 0
        %883 = vmatpush2.bf16.msra.mxu0 0
        %884 = vmatprep.subr.bf16.mxu0 0
        %885 = vmatpush2.bf16.msra.mxu0 0
        %886 = vmatprep.subr.bf16.mxu0 0
        %887 = vmatpush2.bf16.msra.mxu0 0
        %888 = vmatprep.subr.bf16.mxu0 0
        %889 = vmatpush2.bf16.msra.mxu0 0
        %890 = vmatprep.subr.bf16.mxu0 0
        %891 = vmatpush2.bf16.msra.mxu0 0
        %892 = vmatprep.subr.bf16.mxu0 0
        %893 = vmatpush2.bf16.msra.mxu0 0
        %894 = vmatprep.subr.bf16.mxu0 0
        %895 = vmatpush2.bf16.msra.mxu0 0
        %896 = vmatprep.mubr.bf16.mxu0 0
        %897 = vmatmul.mubr.bf16.gmra.mxu0 %v813
        %v898 = vpop.f32.mrf.mxu0
        %v899 = vadd.f32 %v708, %v898
        %v900 = vpop.f32.mrf.mxu0
        %v901 = vpop.f32.mrf.mxu0
        %v902 = vadd.f32 %v708, %v901
        %v903 = vpop.f32.mrf.mxu0
        %904 = vmatprep.mubr.bf16.mxu0 0
        %905 = vmatmul.mubr.bf16.gmra.mxu0 %v816
        %v906 = vpop.f32.mrf.mxu0
        %v907 = vadd.f32 %v708, %v906
        %v908 = vpop.f32.mrf.mxu0
        %v909 = vpop.f32.mrf.mxu0
        %v910 = vadd.f32 %v708, %v909
        %v911 = vpop.f32.mrf.mxu0
        %912 = vmatprep.mubr.bf16.mxu0 0
        %913 = vmatmul.mubr.bf16.gmra.mxu0 %v819
        %v914 = vpop.f32.mrf.mxu0
        %v915 = vadd.f32 %v708, %v914
        %v916 = vpop.f32.mrf.mxu0
        %v917 = vpop.f32.mrf.mxu0
        %v918 = vadd.f32 %v708, %v917
        %v919 = vpop.f32.mrf.mxu0
        %920 = vmatprep.mubr.bf16.mxu0 0
        %921 = vmatmul.mubr.bf16.gmra.mxu0 %v822
        %v922 = vpop.f32.mrf.mxu0
        %v923 = vadd.f32 %v708, %v922
        %v924 = vpop.f32.mrf.mxu0
        %v925 = vpop.f32.mrf.mxu0
        %v926 = vadd.f32 %v708, %v925
        %v927 = vpop.f32.mrf.mxu0
        %928 = vmatprep.mubr.bf16.mxu0 0
        %929 = vmatmul.mubr.bf16.gmra.mxu0 %v825
        %v930 = vpop.f32.mrf.mxu0
        %v931 = vadd.f32 %v708, %v930
        %v932 = vpop.f32.mrf.mxu0
        %v933 = vpop.f32.mrf.mxu0
        %v934 = vadd.f32 %v708, %v933
        %v935 = vpop.f32.mrf.mxu0
        %936 = vmatprep.mubr.bf16.mxu0 0
        %937 = vmatmul.mubr.bf16.gmra.mxu0 %v828
        %v938 = vpop.f32.mrf.mxu0
        %v939 = vadd.f32 %v708, %v938
        %v940 = vpop.f32.mrf.mxu0
        %v941 = vpop.f32.mrf.mxu0
        %v942 = vadd.f32 %v708, %v941
        %v943 = vpop.f32.mrf.mxu0
        %944 = vmatprep.mubr.bf16.mxu0 0
        %945 = vmatmul.mubr.bf16.gmra.mxu0 %v831
        %v946 = vpop.f32.mrf.mxu0
        %v947 = vadd.f32 %v708, %v946
        %v948 = vpop.f32.mrf.mxu0
        %v949 = vpop.f32.mrf.mxu0
        %v950 = vadd.f32 %v708, %v949
        %v951 = vpop.f32.mrf.mxu0
        %952 = vmatprep.mubr.bf16.mxu0 0
        %953 = vmatmul.mubr.bf16.gmra.mxu0 %v834
        %v954 = vpop.f32.mrf.mxu0
        %v955 = vadd.f32 %v708, %v954
        %v956 = vpop.f32.mrf.mxu0
        %v957 = vpop.f32.mrf.mxu0
        %v958 = vadd.f32 %v708, %v957
        %v959 = vpop.f32.mrf.mxu0
        %960 = vmatprep.mubr.bf16.mxu0 0
        %961 = vmatmul.mubr.bf16.gmra.mxu0 %v837
        %v962 = vpop.f32.mrf.mxu0
        %v963 = vadd.f32 %v708, %v962
        %v964 = vpop.f32.mrf.mxu0
        %v965 = vpop.f32.mrf.mxu0
        %v966 = vadd.f32 %v708, %v965
        %v967 = vpop.f32.mrf.mxu0
        %968 = vmatprep.mubr.bf16.mxu0 0
        %969 = vmatmul.mubr.bf16.gmra.mxu0 %v840
        %v970 = vpop.f32.mrf.mxu0
        %v971 = vadd.f32 %v708, %v970
        %v972 = vpop.f32.mrf.mxu0
        %v973 = vpop.f32.mrf.mxu0
        %v974 = vadd.f32 %v708, %v973
        %v975 = vpop.f32.mrf.mxu0
        %976 = vmatprep.mubr.bf16.mxu0 0
        %977 = vmatmul.mubr.bf16.gmra.mxu0 %v843
        %v978 = vpop.f32.mrf.mxu0
        %v979 = vadd.f32 %v708, %v978
        %v980 = vpop.f32.mrf.mxu0
        %v981 = vpop.f32.mrf.mxu0
        %v982 = vadd.f32 %v708, %v981
        %v983 = vpop.f32.mrf.mxu0
        %984 = vmatprep.mubr.bf16.mxu0 0
        %985 = vmatmul.mubr.bf16.gmra.mxu0 %v846
        %v986 = vpop.f32.mrf.mxu0
        %v987 = vadd.f32 %v708, %v986
        %v988 = vpop.f32.mrf.mxu0
        %v989 = vpop.f32.mrf.mxu0
        %v990 = vadd.f32 %v708, %v989
        %v991 = vpop.f32.mrf.mxu0
        %992 = vmatprep.mubr.bf16.mxu0 0
        %993 = vmatmul.mubr.bf16.gmra.mxu0 %v849
        %v994 = vpop.f32.mrf.mxu0
        %v995 = vadd.f32 %v708, %v994
        %v996 = vpop.f32.mrf.mxu0
        %v997 = vpop.f32.mrf.mxu0
        %v998 = vadd.f32 %v708, %v997
        %v999 = vpop.f32.mrf.mxu0
        %1000 = vmatprep.mubr.bf16.mxu0 0
        %1001 = vmatmul.mubr.bf16.gmra.mxu0 %v852
        %v1002 = vpop.f32.mrf.mxu0
        %v1003 = vadd.f32 %v708, %v1002
        %v1004 = vpop.f32.mrf.mxu0
        %v1005 = vpop.f32.mrf.mxu0
        %v1006 = vadd.f32 %v708, %v1005
        %v1007 = vpop.f32.mrf.mxu0
        %1008 = vmatprep.mubr.bf16.mxu0 0
        %1009 = vmatmul.mubr.bf16.gmra.mxu0 %v855
        %v1010 = vpop.f32.mrf.mxu0
        %v1011 = vadd.f32 %v708, %v1010
        %v1012 = vpop.f32.mrf.mxu0
        %v1013 = vpop.f32.mrf.mxu0
        %v1014 = vadd.f32 %v708, %v1013
        %v1015 = vpop.f32.mrf.mxu0
        %1016 = vmatprep.mubr.bf16.mxu0 0
        %1017 = vmatmul.mubr.bf16.gmra.mxu0 %v858
        %v1018 = vpop.f32.mrf.mxu0
        %v1019 = vadd.f32 %v708, %v1018
        %v1020 = vpop.f32.mrf.mxu0
        %v1021 = vpop.f32.mrf.mxu0
        %v1022 = vadd.f32 %v708, %v1021
        %v1023 = vpop.f32.mrf.mxu0
        %1024 = vdwg.mxu0
        %v1025 = vpack.c.bf16 %v902, %v899
        %v1026 = vpack.c.bf16 %v910, %v907
        %v1027 = vpack.c.bf16 %v918, %v915
        %v1028 = vpack.c.bf16 %v926, %v923
        %v1029 = vpack.c.bf16 %v934, %v931
        %v1030 = vpack.c.bf16 %v942, %v939
        %v1031 = vpack.c.bf16 %v950, %v947
        %v1032 = vpack.c.bf16 %v958, %v955
        %v1033 = vpack.c.bf16 %v966, %v963
        %v1034 = vpack.c.bf16 %v974, %v971
        %v1035 = vpack.c.bf16 %v982, %v979
        %v1036 = vpack.c.bf16 %v990, %v987
        %v1037 = vpack.c.bf16 %v998, %v995
        %v1038 = vpack.c.bf16 %v1006, %v1003
        %v1039 = vpack.c.bf16 %v1014, %v1011
        %v1040 = vpack.c.bf16 %v1022, %v1019
        %v1057 = vunpack.c.l.b16 %v1025
        %v1058 = vunpack.c.h.b16 %v1025
        %v1059 = vunpack.c.l.b16 %v1026
        %v1060 = vunpack.c.h.b16 %v1026
        %v1061 = vunpack.c.l.b16 %v1027
        %v1062 = vunpack.c.h.b16 %v1027
        %v1063 = vunpack.c.l.b16 %v1028
        %v1064 = vunpack.c.h.b16 %v1028
        %v1065 = vunpack.c.l.b16 %v1029
        %v1066 = vunpack.c.h.b16 %v1029
        %v1067 = vunpack.c.l.b16 %v1030
        %v1068 = vunpack.c.h.b16 %v1030
        %v1069 = vunpack.c.l.b16 %v1031
        %v1070 = vunpack.c.h.b16 %v1031
        %v1071 = vunpack.c.l.b16 %v1032
        %v1072 = vunpack.c.h.b16 %v1032
        %v1073 = vunpack.c.l.b16 %v1033
        %v1074 = vunpack.c.h.b16 %v1033
        %v1075 = vunpack.c.l.b16 %v1034
        %v1076 = vunpack.c.h.b16 %v1034
        %v1077 = vunpack.c.l.b16 %v1035
        %v1078 = vunpack.c.h.b16 %v1035
        %v1079 = vunpack.c.l.b16 %v1036
        %v1080 = vunpack.c.h.b16 %v1036
        %v1081 = vunpack.c.l.b16 %v1037
        %v1082 = vunpack.c.h.b16 %v1037
        %v1083 = vunpack.c.l.b16 %v1038
        %v1084 = vunpack.c.h.b16 %v1038
        %v1085 = vunpack.c.l.b16 %v1039
        %v1086 = vunpack.c.h.b16 %v1039
        %v1087 = vunpack.c.l.b16 %v1040
        %v1088 = vunpack.c.h.b16 %v1040
        %v1089 = vpack.c.b16 %v1057, %v1057
        %v1090 = vpack.c.b16 %v1058, %v1058
        %v1091 = vpack.c.b16 %v1059, %v1059
        %v1092 = vpack.c.b16 %v1060, %v1060
        %v1093 = vpack.c.b16 %v1061, %v1061
        %v1094 = vpack.c.b16 %v1062, %v1062
        %v1095 = vpack.c.b16 %v1063, %v1063
        %v1096 = vpack.c.b16 %v1064, %v1064
        %v1097 = vpack.c.b16 %v1065, %v1065
        %v1098 = vpack.c.b16 %v1066, %v1066
        %v1099 = vpack.c.b16 %v1067, %v1067
        %v1100 = vpack.c.b16 %v1068, %v1068
        %v1101 = vpack.c.b16 %v1069, %v1069
        %v1102 = vpack.c.b16 %v1070, %v1070
        %v1103 = vpack.c.b16 %v1071, %v1071
        %v1104 = vpack.c.b16 %v1072, %v1072
        %v1105 = vpack.c.b16 %v1073, %v1073
        %v1106 = vpack.c.b16 %v1074, %v1074
        %v1107 = vpack.c.b16 %v1075, %v1075
        %v1108 = vpack.c.b16 %v1076, %v1076
        %v1109 = vpack.c.b16 %v1077, %v1077
        %v1110 = vpack.c.b16 %v1078, %v1078
        %v1111 = vpack.c.b16 %v1079, %v1079
        %v1112 = vpack.c.b16 %v1080, %v1080
        %v1113 = vpack.c.b16 %v1081, %v1081
        %v1114 = vpack.c.b16 %v1082, %v1082
        %v1115 = vpack.c.b16 %v1083, %v1083
        %v1116 = vpack.c.b16 %v1084, %v1084
        %v1117 = vpack.c.b16 %v1085, %v1085
        %v1118 = vpack.c.b16 %v1086, %v1086
        %v1119 = vpack.c.b16 %v1087, %v1087
        %v1120 = vpack.c.b16 %v1088, %v1088
        %1153 = vst [vmem:[%s274] sm:$0xf] %v1089
        %1154 = vst [vmem:[%s274 + $0x4] sm:$0xf] %v1090
        %1155 = vst [vmem:[%s274 + $0x8] sm:$0xf] %v1091
        %1156 = vst [vmem:[%s274 + $0xc] sm:$0xf] %v1092
        %1157 = vst [vmem:[%s274 + $0x10] sm:$0xf] %v1093
        %1158 = vst [vmem:[%s274 + $0x14] sm:$0xf] %v1094
        %1159 = vst [vmem:[%s274 + $0x18] sm:$0xf] %v1095
        %1160 = vst [vmem:[%s274 + $0x1c] sm:$0xf] %v1096
        %1161 = vst [vmem:[%s274 + $0x20] sm:$0xf] %v1097
        %1162 = vst [vmem:[%s274 + $0x24] sm:$0xf] %v1098
        %1163 = vst [vmem:[%s274 + $0x28] sm:$0xf] %v1099
        %1164 = vst [vmem:[%s274 + $0x2c] sm:$0xf] %v1100
        %1165 = vst [vmem:[%s274 + $0x30] sm:$0xf] %v1101
        %1166 = vst [vmem:[%s274 + $0x34] sm:$0xf] %v1102
        %1167 = vst [vmem:[%s274 + $0x38] sm:$0xf] %v1103
        %1168 = vst [vmem:[%s274 + $0x3c] sm:$0xf] %v1104
        %1169 = vst [vmem:[%s274 + $0x40] sm:$0xf] %v1105
        %1170 = vst [vmem:[%s274 + $0x44] sm:$0xf] %v1106
        %1171 = vst [vmem:[%s274 + $0x48] sm:$0xf] %v1107
        %1172 = vst [vmem:[%s274 + $0x4c] sm:$0xf] %v1108
        %1173 = vst [vmem:[%s274 + $0x50] sm:$0xf] %v1109
        %1174 = vst [vmem:[%s274 + $0x54] sm:$0xf] %v1110
        %1175 = vst [vmem:[%s274 + $0x58] sm:$0xf] %v1111
        %1176 = vst [vmem:[%s274 + $0x5c] sm:$0xf] %v1112
        %1177 = vst [vmem:[%s274 + $0x60] sm:$0xf] %v1113
        %1178 = vst [vmem:[%s274 + $0x64] sm:$0xf] %v1114
        %1179 = vst [vmem:[%s274 + $0x68] sm:$0xf] %v1115
        %1180 = vst [vmem:[%s274 + $0x6c] sm:$0xf] %v1116
        %1181 = vst [vmem:[%s274 + $0x70] sm:$0xf] %v1117
        %1182 = vst [vmem:[%s274 + $0x74] sm:$0xf] %v1118
        %1183 = vst [vmem:[%s274 + $0x78] sm:$0xf] %v1119
        %1184 = vst [vmem:[%s274 + $0x7c] sm:$0xf] %v1120
        %s1185 = sand.u32 %s178, 1
        %s1186 = scalar_lea.sflag [#allocation4], %s1185
        %s1187 = sand.u32 %s178, 1
        %s1188 = smul.addr %s1187, 128
        %s1189 = scalar_lea.vmem [#allocation3], %s1188
        // Predicated region
        $region49: #{tpu_custom_call.1} parent=43 // pred_check
          %p1190 = pneg %p188
        $region50: #{tpu_custom_call.1} parent=43 // pred_check_branch
          %1192 = sbr.rel (%p1190) target = $region52
        $region51: #{tpu_custom_call.1} parent=43 // pred_region
          %s1193 = smul.u32 32, %s25
          %s1195 = ssub.s32 2048, 2048
          %1196 = vsyncadd %s1186, %s1195
          %s1197 = smul.addr %s24, 32
          %s1198 = sadd.s32 %s1193, %s1197
          %s1199 = smul.addr %s1198, 64
          %s1200 = scalar_lea.hbm %s6, %s1199
          %s1201 = sshll.u32 %s1189, 4
          %s1202 = int_to_ptr.vmem [resolvable:$true] %s1201
          %1207 = dma.vmem_to_hbm [thread:$0]  %s1202, 2048, %s1200, %s1186, 64, 64, 4
        $region52: #{tpu_custom_call.1} parent=43 // pred_fallthru
          _
      $region44: #{tpu_custom_call.1} parent=5 // pred_fallthru
        _
      %p1208 = scmp.le.s32.totalorder 2, %s15
      // Predicated region
      $region53: #{tpu_custom_call.1} parent=5 // pred_check
        %p1209 = pneg %p1208
      $region54: #{tpu_custom_call.1} parent=5 // pred_check_branch
        %1211 = sbr.rel (%p1209) target = $region56
      $region55: #{tpu_custom_call.1} parent=5 // pred_region
        %s1212 = ssub.s32 %s15, 2
        // Predicated region
        $region57: #{tpu_custom_call.1} parent=55 // pred_check
          %p1213 = pneg %p194
        $region58: #{tpu_custom_call.1} parent=55 // pred_check_branch
          %1215 = sbr.rel (%p1213) target = $region60
        $region59: #{tpu_custom_call.1} parent=55 // pred_region
          %s1216 = sand.u32 %s179, 1
          %s1217 = scalar_lea.sflag [#allocation4], %s1216
          %s1218 = sand.u32 %s179, 1
          %s1219 = smul.addr %s1218, 128
          %s1220 = scalar_lea.vmem [#allocation3], %s1219
          %1221 = dma.done %s1217, 2048
        $region60: #{tpu_custom_call.1} parent=55 // pred_fallthru
          _
      $region56: #{tpu_custom_call.1} parent=5 // pred_fallthru
        _
    $region6: #{tpu_custom_call.1} parent=1 // loop_footer
      %s19 = sadd.s32 1, %s15
    $region7: #{tpu_custom_call.1} parent=1 // loop_footer_branch
      %14 = sbr.rel target = $region3
    $region8: #{tpu_custom_call.1} parent=1 // loop_exit
      _
    %1222 = vsyncpa [#allocation4], 1
    %s1223 = scalar_lea.sflag [#allocation4], 1
    %1224 = vsyncpa %s1223, 1

</llo_original>
